<compile_context>
chip_gen: v6e
topology: v6e:2x2x1
jax: 0.10.0
libtpu: 0.0.40
codegen_flags: <defaults>
</compile_context>

<pallas_src>
import jax
import jax.numpy as jnp
from jax.experimental import pallas as pl
from jax.experimental.pallas import tpu as pltpu


# --------------------------------------------------------------------------
# Hardware / layout helpers
# --------------------------------------------------------------------------

def _round_up(x, m):
    return ((x + m - 1) // m) * m


def _sublane_for(dtype):
    """Packed sublane tile for a dtype: f32 -> 8, bf16 -> 16, int8/fp8 -> 32."""
    itemsize = jnp.dtype(dtype).itemsize
    return 8 * max(1, 4 // max(itemsize, 1))


def _vmem_budget():
    """(pipeline-buffer budget, physical VMEM capacity) per TensorCore."""
    cap = 64 << 20  # conservative fallback = v7x per-TC VMEM
    try:
        info = pltpu.get_tpu_info()
        cap = int(getattr(info, "vmem_capacity_bytes", cap)) or cap
    except Exception:
        pass
    # ~half of physical VMEM for this kernel's working set (pipeline buffers
    # + f32 temporaries), capped; leaves headroom for compiler scratch.
    #   v5e/v6e (128 MiB) -> 64 MiB        v7x (64 MiB) -> 32 MiB
    budget = max(16 << 20, min(cap // 2, 96 << 20))
    return budget, cap


def _vmem_limit_bytes(est_bytes, cap):
    """Explicit scoped-VMEM limit: cover the estimate with margin, never
    exceed ~85% of physical VMEM (important on v7x's 64 MiB)."""
    return int(min(int(cap * 0.85), max(2 * est_bytes + (8 << 20), 32 << 20)))


def _channel_tile_candidates(C, sublane):
    cands = {C}
    for d in range(sublane, C, sublane):
        if C % d == 0:
            cands.add(d)
    return sorted(cands)


# --------------------------------------------------------------------------
# Resident single-pass path (whole channel stripe in VMEM)
# --------------------------------------------------------------------------

def _resident_step_bytes(N, tc, HW, itemsize, sublane):
    """Estimated VMEM for one pipelined grid step, including (8,128) layout
    padding and the f32 compute temporaries (not just the raw tile bytes)."""
    hw_pad = _round_up(HW, 128)
    blk = N * _round_up(tc, sublane) * hw_pad * itemsize     # one x / y tile
    f32_blk = N * _round_up(tc, 8) * hw_pad * 4              # one f32 temp tile
    # 2x double-buffered input + 2x double-buffered output + ~2 f32 temps.
    return 2 * blk + 2 * blk + 2 * f32_blk


def _pick_channel_tile(N, C, HW, itemsize, sublane, budget, min_steps=4):
    """Largest channel tile that (a) fits the VMEM budget and (b) yields at
    least `min_steps` grid steps when C allows it, preferring an even step
    count (megacore on v7x).  Returns None when even the smallest legal tile
    does not fit -> caller takes the streaming two-pass path."""
    fitting = [tc for tc in _channel_tile_candidates(C, sublane)
               if _resident_step_bytes(N, tc, HW, itemsize, sublane) <= budget]
    if not fitting:
        return None

    def score(tc):
        steps = C // tc
        return (min(steps, min_steps),        # want >= min_steps grid steps
                1 if steps % 2 == 0 else 0,   # even steps split across 2 TCs
                tc)                           # then the largest tile
    return max(fitting, key=score)


def _make_resident_kernel(eps, out_p, total_m):
    """eps: python float, out_p: python bool, total_m: python int (N*H*W).
    No jnp scalars are captured by the closure (they must stay literals)."""
    inv_m = 1.0 / float(total_m)
    inv_m1 = 1.0 / float(max(total_m - 1, 1))   # torch.var default: /(M-1)

    def kernel(x_ref, w_ref, b_ref, o_ref):
        # x block: (N, tc, HW); w/b blocks: (1, tc, 1)
        xf = x_ref[...].astype(jnp.float32)

        # Two-pass stats within the tile (numerically stable).
        mu = jnp.sum(xf, axis=(0, 2), keepdims=True) * inv_m        # (1, tc, 1)
        d = xf - mu
        var = jnp.sum(d * d, axis=(0, 2), keepdims=True) * inv_m1   # (1, tc, 1)

        if out_p:
            denom = jnp.sqrt(var + eps)
        else:
            denom = jnp.sqrt(var) + eps

        # Fold mean + affine into per-channel scale/shift: `d` dies after the
        # variance reduction and the per-element hot loop is one mul + add.
        scale = w_ref[...] / denom                                   # (1, tc, 1)
        shift = b_ref[...] - mu * scale                              # (1, tc, 1)
        o_ref[...] = (xf * scale + shift).astype(o_ref.dtype)

    return kernel


# --------------------------------------------------------------------------
# Streaming two-pass path (channel stripe too big for VMEM)
# --------------------------------------------------------------------------

def _stats_kernel(x_ref, sum_ref, sq_ref):
    # Output blocks stay resident across the (N, HW) reduction axes.
    @pl.when((pl.program_id(1) == 0) & (pl.program_id(2) == 0))
    def _():
        sum_ref[...] = jnp.zeros_like(sum_ref)
        sq_ref[...] = jnp.zeros_like(sq_ref)

    xf = x_ref[...].astype(jnp.float32)
    sum_ref[...] += jnp.sum(xf, axis=(0, 2), keepdims=True)
    sq_ref[...] += jnp.sum(xf * xf, axis=(0, 2), keepdims=True)


def _norm_kernel(x_ref, scale_ref, shift_ref, o_ref):
    o_ref[...] = (x_ref[...].astype(jnp.float32) * scale_ref[...]
                  + shift_ref[...]).astype(o_ref.dtype)


def _streaming_step_bytes(tn, tc, thw, itemsize, sublane):
    hw_pad = _round_up(thw, 128)
    blk = tn * _round_up(tc, sublane) * hw_pad * itemsize
    f32_blk = tn * _round_up(tc, 8) * hw_pad * 4
    return 4 * blk + 2 * f32_blk   # 2x in + 2x out double buffers + f32 temps


def _pick_streaming_tiles(N, C, HW, itemsize, sublane, budget):
    tc_cands = _channel_tile_candidates(C, sublane)
    tn_cands = sorted({d for d in range(1, N + 1) if N % d == 0}, reverse=True)
    if HW % 128 == 0:
        thw_cands = sorted({t for t in range(128, HW + 1, 128) if HW % t == 0},
                           reverse=True)
    else:
        # TODO(synk): pad HW to a multiple of 128 (masked tail) so spatial
        # streaming also covers 7x7/14x14 stages with huge N on v7x.
        thw_cands = [HW]

    tc = tc_cands[0]
    for thw in thw_cands:          # prefer lane-dense (large) spatial tiles
        for tn in tn_cands:        # then large batch tiles
            if _streaming_step_bytes(tn, tc, thw, itemsize, sublane) <= budget:
                # Grow the channel tile while it fits, keeping >= 2 channel
                # tiles when possible so the parallel axis splits over 2 TCs.
                for c in tc_cands:
                    ok = _streaming_step_bytes(tn, c, thw, itemsize, sublane) <= budget
                    if ok and (C // c >= 2 or c == tc_cands[0]):
                        tc = c
                return tn, tc, thw
    # Nothing fits the budget: smallest legal blocks; vmem_limit absorbs it.
    return tn_cands[-1], tc_cands[0], thw_cands[-1]


# --------------------------------------------------------------------------
# Public wrapper
# --------------------------------------------------------------------------

def cbatchnorm2d(x, weight, bias, *, eps=1e-5, out_p=False,
                 channel_tile=None, force_streaming=False):
    """CBatchNorm2d forward (training mode, buffer_num=0 simple-BN branch).

    x: (N, C, H, W); weight, bias: (C,) affine parameters.
    """
    N, C, H, W = x.shape
    HW = H * W
    M = N * HW
    itemsize = jnp.dtype(x.dtype).itemsize
    sublane = _sublane_for(x.dtype)
    budget, cap = _vmem_budget()

    # Free, contiguous reshapes only (no NCHW transposes).
    # TODO(synk): for late CNN stages (HW=49/196/784) an NHWC/channel-last
    # layout with C on the lane axis is substantially more lane-dense; here we
    # keep the module's NCHW layout and budget for the lane padding instead.
    x3d = x.reshape(N, C, HW)
    w3d = weight.reshape(1, C, 1).astype(jnp.float32)
    b3d = bias.reshape(1, C, 1).astype(jnp.float32)

    if channel_tile is not None and not force_streaming:
        tc = int(channel_tile)
        assert C % tc == 0, "channel tile must divide C"
    elif force_streaming:
        tc = None
    else:
        tc = _pick_channel_tile(N, C, HW, itemsize, sublane, budget)

    if tc is not None:
        # ---- single-pass resident path: stats + normalize in one x read ----
        est = _resident_step_bytes(N, tc, HW, itemsize, sublane)
        kernel = _make_resident_kernel(float(eps), bool(out_p), M)
        y3d = pl.pallas_call(
            kernel,
            out_shape=jax.ShapeDtypeStruct((N, C, HW), x.dtype),
            grid=(C // tc,),
            in_specs=[
                pl.BlockSpec((N, tc, HW), lambda i: (0, i, 0)),
                # weight/bias tiles are tiny; their per-step DMAs hide under
                # the pipelined x tiles.
                pl.BlockSpec((1, tc, 1), lambda i: (0, i, 0)),
                pl.BlockSpec((1, tc, 1), lambda i: (0, i, 0)),
            ],
            out_specs=pl.BlockSpec((N, tc, HW), lambda i: (0, i, 0)),
            compiler_params=pltpu.CompilerParams(
                dimension_semantics=("parallel",),
                vmem_limit_bytes=_vmem_limit_bytes(est, cap)),
            cost_estimate=pl.CostEstimate(
                flops=5 * N * C * HW, transcendentals=C,
                bytes_accessed=2 * x.size * itemsize + 2 * C * 4),
        )(x3d, w3d, b3d)
        return y3d.reshape(N, C, H, W)

    # ---- streaming two-pass path: stripe does not fit VMEM ----
    tn, tcs, thw = _pick_streaming_tiles(N, C, HW, itemsize, sublane, budget)
    grid = (C // tcs, N // tn, HW // thw)
    x_spec = pl.BlockSpec((tn, tcs, thw), lambda i, j, k: (j, i, k))
    ch_spec = pl.BlockSpec((1, tcs, 1), lambda i, j, k: (0, i, 0))
    est = _streaming_step_bytes(tn, tcs, thw, itemsize, sublane)
    vmem_limit = _vmem_limit_bytes(est, cap)

    # Pass 1: per-channel sum and sum-of-squares (reduction axes last).
    sums, sqsums = pl.pallas_call(
        _stats_kernel,
        out_shape=(jax.ShapeDtypeStruct((1, C, 1), jnp.float32),
                   jax.ShapeDtypeStruct((1, C, 1), jnp.float32)),
        grid=grid,
        in_specs=[x_spec],
        out_specs=(ch_spec, ch_spec),
        compiler_params=pltpu.CompilerParams(
            dimension_semantics=("parallel", "arbitrary", "arbitrary"),
            vmem_limit_bytes=vmem_limit),
        cost_estimate=pl.CostEstimate(
            flops=3 * N * C * HW, transcendentals=0,
            bytes_accessed=x.size * itemsize),
    )(x3d)

    # O(C) per-channel math in plain JAX.
    mu = sums / float(M)
    var = (sqsums - float(M) * mu * mu) / float(max(M - 1, 1))
    var = jnp.maximum(var, 0.0)           # guard E[x^2]-E[x]^2 rounding
    if out_p:
        denom = jnp.sqrt(var + eps)
    else:
        denom = jnp.sqrt(var) + eps
    scale = w3d / denom
    shift = b3d - mu * scale

    # Pass 2: y = x * scale + shift (lane-dense elementwise kernel).
    y3d = pl.pallas_call(
        _norm_kernel,
        out_shape=jax.ShapeDtypeStruct((N, C, HW), x.dtype),
        grid=grid,
        in_specs=[x_spec, ch_spec, ch_spec],
        out_specs=x_spec,
        compiler_params=pltpu.CompilerParams(
            dimension_semantics=("parallel", "parallel", "arbitrary"),
            vmem_limit_bytes=vmem_limit),
        cost_estimate=pl.CostEstimate(
            flops=2 * N * C * HW, transcendentals=0,
            bytes_accessed=2 * x.size * itemsize),
    )(x3d, scale, shift)
    return y3d.reshape(N, C, H, W)


# --------------------------------------------------------------------------
# Reference + self-test
# --------------------------------------------------------------------------

def _reference(x, weight, bias, eps=1e-5, out_p=False):
    xf = x.astype(jnp.float32)
    mu = jnp.mean(xf, axis=(0, 2, 3), keepdims=True)
    var = jnp.var(xf, axis=(0, 2, 3), keepdims=True, ddof=1)
    if out_p:
        y = (xf - mu) / jnp.sqrt(var + eps)
    else:
        y = (xf - mu) / (jnp.sqrt(var) + eps)
    y = weight.reshape(1, -1, 1, 1) * y + bias.reshape(1, -1, 1, 1)
    return y.astype(x.dtype)


if __name__ == "__main__":
    key = jax.random.PRNGKey(0)
    kx1, kw1, kx2, kw2, kx3, kw3 = jax.random.split(key, 6)

    # Case 1: small shape, whole-C stripe (C < sublane, single grid step).
    N, C, H, W = 2, 4, 16, 16
    x = jax.random.normal(kx1, (N, C, H, W), dtype=jnp.float32)
    weight = jax.random.uniform(kw1, (C,), dtype=jnp.float32)  # reset_parameters: U[0,1)
    bias = jnp.zeros((C,), dtype=jnp.float32)

    out = jax.block_until_ready(cbatchnorm2d(x, weight, bias, eps=1e-5))
    ref = _reference(x, weight, bias, eps=1e-5)
    assert out.shape == (N, C, H, W)
    assert jnp.allclose(out, ref, atol=1e-4, rtol=1e-4)

    # Case 2: auto-picked multi-step pipelined grid (>= 4 channel tiles).
    N2, C2, H2, W2 = 2, 32, 8, 8
    x2 = jax.random.normal(kx2, (N2, C2, H2, W2), dtype=jnp.float32)
    w2 = jax.random.uniform(kw2, (C2,), dtype=jnp.float32)
    b2 = jnp.zeros((C2,), dtype=jnp.float32)

    out2 = jax.block_until_ready(cbatchnorm2d(x2, w2, b2, eps=1e-5))
    ref2 = _reference(x2, w2, b2, eps=1e-5)
    assert jnp.allclose(out2, ref2, atol=1e-4, rtol=1e-4)

    # Case 3: exercise the streaming two-pass fallback explicitly.
    N3, C3, H3, W3 = 2, 16, 16, 16
    x3 = jax.random.normal(kx3, (N3, C3, H3, W3), dtype=jnp.float32)
    w3 = jax.random.uniform(kw3, (C3,), dtype=jnp.float32)
    b3 = jnp.zeros((C3,), dtype=jnp.float32)

    out3 = jax.block_until_ready(
        cbatchnorm2d(x3, w3, b3, eps=1e-5, force_streaming=True))
    ref3 = _reference(x3, w3, b3, eps=1e-5)
    assert jnp.allclose(out3, ref3, atol=1e-4, rtol=1e-4)

    print("KERNEL_OK")
</pallas_src>

<mosaic_0001>
module attributes {stable_mosaic.version = 11 : i64} {
  func.func @kernel(%arg0: i32, %arg1: memref<2x4x256xf32, #tpu.memory_space<vmem>>, %arg2: memref<1x4x1xf32, #tpu.memory_space<vmem>>, %arg3: memref<1x4x1xf32, #tpu.memory_space<vmem>>, %arg4: memref<2x4x256xf32, #tpu.memory_space<vmem>>) attributes {dimension_semantics = [#tpu.dimension_semantics<parallel>], iteration_bounds = array<i64: 1>, scalar_prefetch = 0 : i64, scratch_operands = 0 : i64, tpu.core_type = #tpu.core_type<tc>, window_params = [{transform_indices = @transform_0, window_bounds = array<i64: 2, 4, 256>}, {transform_indices = @transform_1, window_bounds = array<i64: 1, 4, 1>}, {transform_indices = @transform_2, window_bounds = array<i64: 1, 4, 1>}, {transform_indices = @transform_3, window_bounds = array<i64: 2, 4, 256>}]} {
    %c0 = arith.constant 0 : index
    %c0_0 = arith.constant 0 : index
    %c0_1 = arith.constant 0 : index
    %0 = vector.load %arg1[%c0, %c0_0, %c0_1] : memref<2x4x256xf32, #tpu.memory_space<vmem>>, vector<2x4x256xf32>
    %cst = arith.constant dense<0.000000e+00> : vector<4xf32>
    %1 = vector.multi_reduction <add>, %0, %cst [0, 2] : vector<2x4x256xf32> to vector<4xf32>
    %2 = vector.shape_cast %1 : vector<4xf32> to vector<1x4x1xf32>
    %cst_2 = arith.constant 0.001953125 : f32
    %3 = vector.broadcast %cst_2 : f32 to vector<1x4x1xf32>
    %4 = arith.mulf %2, %3 : vector<1x4x1xf32>
    %5 = vector.broadcast %4 : vector<1x4x1xf32> to vector<2x4x256xf32>
    %6 = arith.subf %0, %5 : vector<2x4x256xf32>
    %7 = arith.mulf %6, %6 : vector<2x4x256xf32>
    %cst_3 = arith.constant dense<0.000000e+00> : vector<4xf32>
    %8 = vector.multi_reduction <add>, %7, %cst_3 [0, 2] : vector<2x4x256xf32> to vector<4xf32>
    %9 = vector.shape_cast %8 : vector<4xf32> to vector<1x4x1xf32>
    %cst_4 = arith.constant 0.00195694715 : f32
    %10 = vector.broadcast %cst_4 : f32 to vector<1x4x1xf32>
    %11 = arith.mulf %9, %10 : vector<1x4x1xf32>
    %12 = math.sqrt %11 : vector<1x4x1xf32>
    %cst_5 = arith.constant 9.99999974E-6 : f32
    %13 = vector.broadcast %cst_5 : f32 to vector<1x4x1xf32>
    %14 = arith.addf %12, %13 : vector<1x4x1xf32>
    %c0_6 = arith.constant 0 : index
    %c0_7 = arith.constant 0 : index
    %c0_8 = arith.constant 0 : index
    %15 = vector.load %arg2[%c0_6, %c0_7, %c0_8] : memref<1x4x1xf32, #tpu.memory_space<vmem>>, vector<1x4x1xf32>
    %16 = arith.divf %15, %14 : vector<1x4x1xf32>
    %c0_9 = arith.constant 0 : index
    %c0_10 = arith.constant 0 : index
    %c0_11 = arith.constant 0 : index
    %17 = vector.load %arg3[%c0_9, %c0_10, %c0_11] : memref<1x4x1xf32, #tpu.memory_space<vmem>>, vector<1x4x1xf32>
    %18 = arith.mulf %4, %16 : vector<1x4x1xf32>
    %19 = arith.subf %17, %18 : vector<1x4x1xf32>
    %20 = vector.broadcast %16 : vector<1x4x1xf32> to vector<2x4x256xf32>
    %21 = arith.mulf %0, %20 : vector<2x4x256xf32>
    %22 = vector.broadcast %19 : vector<1x4x1xf32> to vector<2x4x256xf32>
    %23 = arith.addf %21, %22 : vector<2x4x256xf32>
    %c0_12 = arith.constant 0 : index
    %c0_13 = arith.constant 0 : index
    %c0_14 = arith.constant 0 : index
    %24 = vector.load %arg4[%c0_12, %c0_13, %c0_14] : memref<2x4x256xf32, #tpu.memory_space<vmem>>, vector<2x4x256xf32>
    tpu.vector_store %arg4[%c0_12, %c0_13, %c0_14], %23 {strides = array<i32>} : memref<2x4x256xf32, #tpu.memory_space<vmem>>, vector<2x4x256xf32>,
    return
  }
  func.func @transform_0(%arg0: i32) -> (i32, i32, i32) {
    %c0_i32 = arith.constant 0 : i32
    %c0_i32_0 = arith.constant 0 : i32
    %c0_i32_1 = arith.constant 0 : i32
    return %c0_i32, %arg0, %c0_i32_0 : i32, i32, i32
  }
  func.func @transform_1(%arg0: i32) -> (i32, i32, i32) {
    %c0_i32 = arith.constant 0 : i32
    %c0_i32_0 = arith.constant 0 : i32
    %c0_i32_1 = arith.constant 0 : i32
    return %c0_i32, %arg0, %c0_i32_0 : i32, i32, i32
  }
  func.func @transform_2(%arg0: i32) -> (i32, i32, i32) {
    %c0_i32 = arith.constant 0 : i32
    %c0_i32_0 = arith.constant 0 : i32
    %c0_i32_1 = arith.constant 0 : i32
    return %c0_i32, %arg0, %c0_i32_0 : i32, i32, i32
  }
  func.func @transform_3(%arg0: i32) -> (i32, i32, i32) {
    %c0_i32 = arith.constant 0 : i32
    %c0_i32_0 = arith.constant 0 : i32
    %c0_i32_1 = arith.constant 0 : i32
    return %c0_i32, %arg0, %c0_i32_0 : i32, i32, i32
  }
}

</mosaic_0001>

<llo_original>
// kernel: tpu_custom_call.1
$region0: #{tpu_custom_call.1}
  #allocation0 [shape = 'u32[]', space=smem, size = 0x4, offset = 0x4, fixed_abs, tag = 'smem constant byte address 0x4 - core index']
  #allocation1 [shape = 'u32[144,128]{1,0:T(1,128)}', space=vmem, size = 0x12000, scoped, tag = 'internal scratch']
  %s0 = inlined_call_operand.hbm [shape: f32[2,4,256], index: 0, kind: input, shape index: {}]
  %s1 = inlined_call_operand.vmem [shape: f32[1,4,1], index: 1, kind: input, shape index: {}]
  %s2 = inlined_call_operand.vmem [shape: f32[1,4,1], index: 2, kind: input, shape index: {}]
  %s3 = inlined_call_operand.hbm [shape: f32[2,4,256], index: 3, kind: output, shape index: {}]
  %s4 = sld [smem:[#allocation0]]
  $region26: #{tpu_custom_call.1} parent=0
    _
  %s6 = ssub.s32 1, %s4
  %s7 = scalar_select 0, %s6, %s4
  $region1: #{tpu_custom_call.1} parent=0
    #allocation2 [shape = 'u8[8192]{0}', space=vmem, size = 0x2000, scoped, tag = 'input window, operand 0, single buffered']
    #allocation3 [shape = 's32[1]{0}', space=sflag, size = 0x4, scoped, tag = 'scoped memory for tpu_custom_call.1']
    #allocation4 [shape = 's32[1]{0}', space=sflag, size = 0x4, scoped, tag = 'scoped memory for tpu_custom_call.1']
    #allocation5 [shape = 'u8[8192]{0}', space=vmem, size = 0x2000, scoped, tag = 'output window, operand 0, single buffered']
    %8 = vsyncpa [#allocation3], 0
    %9 = vsyncpa [#allocation4], 0
    // Predicated region
    $region2: #{tpu_custom_call.1} parent=1 // pred_check
      _
    $region3: #{tpu_custom_call.1} parent=1 // pred_check_branch
      %11 = sbr.rel (0) target = $region5
    $region4: #{tpu_custom_call.1} parent=1 // pred_region
      %s13 = ssub.s32 256, 256
      %14 = vsyncadd [#allocation3], %s13
      %s15 = sshll.u32 [#allocation2], 4
      %s16 = int_to_ptr.vmem [resolvable:$true] %s15
      %21 = dma.hbm_to_vmem [thread:$0]  %s0, 256, %s16, [#allocation3], 128, 128, 8
    $region5: #{tpu_custom_call.1} parent=1 // pred_fallthru
      _
    // Predicated region
    $region6: #{tpu_custom_call.1} parent=1 // pred_check
      _
    $region7: #{tpu_custom_call.1} parent=1 // pred_check_branch
      %23 = sbr.rel (0) target = $region9
    $region8: #{tpu_custom_call.1} parent=1 // pred_region
      _
    $region9: #{tpu_custom_call.1} parent=1 // pred_fallthru
      _
    // Predicated region
    $region10: #{tpu_custom_call.1} parent=1 // pred_check
      _
    $region11: #{tpu_custom_call.1} parent=1 // pred_check_branch
      %25 = sbr.rel (0) target = $region13
    $region12: #{tpu_custom_call.1} parent=1 // pred_region
      _
    $region13: #{tpu_custom_call.1} parent=1 // pred_fallthru
      _
    // Predicated region
    $region14: #{tpu_custom_call.1} parent=1 // pred_check
      _
    $region15: #{tpu_custom_call.1} parent=1 // pred_check_branch
      %27 = sbr.rel (0) target = $region17
    $region16: #{tpu_custom_call.1} parent=1 // pred_region
      %28 = dma.done [#allocation3], 256
    $region17: #{tpu_custom_call.1} parent=1 // pred_fallthru
      _
    %v29 = vld [vmem:[#allocation2] sm:$0xff]
    %v30 = vld [vmem:[#allocation2 + $0x8] sm:$0xff]
    %v33 = vcombine.high %v29, %v29
    %v34 = vcombine.high %v30, %v30
    %vm37 = vcmask 1043456
    %v38 = vsel %vm37, %v29, 0.0
    %v39 = vsel %vm37, %v33, 0.0
    %v40 = vadd.f32 %v38, %v39
    %v41 = vsel %vm37, %v30, 0.0
    %v42 = vadd.f32 %v40, %v41
    %v43 = vsel %vm37, %v34, 0.0
    %v44 = vadd.f32 %v42, %v43
    %45 = vadd.xlane.f32.xlu0 %v44
    %v46 = vpop.xlane.xlu0 %45
    %v47 = vmul.f32 %v46, 0.001953125
    %v50 = vunpack.c.l.s4 839922192
    %v51 = vunpack.c.0.s8 %v50
    %v52 = vlaneseq
    %v53 = vshrl.u32 %v52, 7
    %v54 = vsub.s32 %v51, %v53
    %v55 = vrot.slane %v47, %v54
    %v57 = vsub.f32 %v29, %v55
    %v58 = vsub.f32 %v30, %v55
    %v59 = vmul.f32 %v57, %v57
    %v60 = vmul.f32 %v58, %v58
    %v63 = vcombine.high %v59, %v59
    %v64 = vcombine.high %v60, %v60
    %v67 = vsel %vm37, %v59, 0.0
    %v68 = vsel %vm37, %v63, 0.0
    %v69 = vadd.f32 %v67, %v68
    %v70 = vsel %vm37, %v60, 0.0
    %v71 = vadd.f32 %v69, %v70
    %v72 = vsel %vm37, %v64, 0.0
    %v73 = vadd.f32 %v71, %v72
    %74 = vadd.xlane.f32.xlu0 %v73
    %v75 = vpop.xlane.xlu0 %74
    %v76 = vmul.f32 %v75, 0.0019569471
    %v77 = vrsqrt.pop %v76
    %v78 = vmul.f32 %v76, %v77
    %vm79 = vcmp.eq.f32.partialorder %v76, inf
    %v80 = vsel %vm79, %v76, %v78
    %vm81 = vcmp.eq.f32.partialorder %v76, 0.0
    %v82 = vand.u32 %v76, 2147483648
    %v83 = vsel %vm81, %v82, %v80
    %v84 = vadd.f32 %v83, 1e-05
    %v85 = vld [vmem:[%s1] sm:$0xf]
    %v86 = vrcp.pop %v84
    %v87 = vmul.f32 %v85, %v86
    %v88 = vld [vmem:[%s2] sm:$0xf]
    %v89 = vmul.f32 %v47, %v87
    %v90 = vsub.f32 %v88, %v89
    %92 = vset.pattern.permute.xlu0 0
    %93 = vperm.xlu0 %92, %v87
    %v94 = vpop.permute.xlu0 %93
    %v96 = vunpack.c.l.s4 839922192
    %v97 = vunpack.c.0.s8 %v96
    %v98 = vlaneseq
    %v99 = vshrl.u32 %v98, 7
    %v100 = vsub.s32 %v97, %v99
    %v101 = vrot.slane %v94, %v100
    %v103 = vmul.f32 %v29, %v101
    %v104 = vmul.f32 %v30, %v101
    %106 = vset.pattern.permute.xlu0 0
    %107 = vperm.xlu0 %106, %v90
    %v108 = vpop.permute.xlu0 %107
    %v110 = vunpack.c.l.s4 839922192
    %v111 = vunpack.c.0.s8 %v110
    %v112 = vlaneseq
    %v113 = vshrl.u32 %v112, 7
    %v114 = vsub.s32 %v111, %v113
    %v115 = vrot.slane %v108, %v114
    %v117 = vadd.f32 %v103, %v115
    %v118 = vadd.f32 %v104, %v115
    %119 = vst [vmem:[#allocation5] sm:$0xff] %v117
    %120 = vst [vmem:[#allocation5 + $0x8] sm:$0xff] %v118
    // Predicated region
    $region18: #{tpu_custom_call.1} parent=1 // pred_check
      _
    $region19: #{tpu_custom_call.1} parent=1 // pred_check_branch
      %122 = sbr.rel (0) target = $region21
    $region20: #{tpu_custom_call.1} parent=1 // pred_region
      %s124 = ssub.s32 256, 256
      %125 = vsyncadd [#allocation4], %s124
      %s126 = sshll.u32 [#allocation5], 4
      %s127 = int_to_ptr.vmem [resolvable:$true] %s126
      %132 = dma.vmem_to_hbm [thread:$0]  %s127, 256, %s3, [#allocation4], 128, 128, 8
    $region21: #{tpu_custom_call.1} parent=1 // pred_fallthru
      _
    // Predicated region
    $region22: #{tpu_custom_call.1} parent=1 // pred_check
      _
    $region23: #{tpu_custom_call.1} parent=1 // pred_check_branch
      %134 = sbr.rel (0) target = $region25
    $region24: #{tpu_custom_call.1} parent=1 // pred_region
      %135 = dma.done [#allocation4], 256
    $region25: #{tpu_custom_call.1} parent=1 // pred_fallthru
      _
    %136 = vsyncpa [#allocation3], 1
    %137 = vsyncpa [#allocation4], 1

</llo_original>
